<compile_context>
chip_gen: v7x
topology: tpu7x:2x2x1
jax: 0.10.0
libtpu: 0.0.40
codegen_flags: <defaults>
</compile_context>

<pallas_src>
import jax
import jax.numpy as jnp
from jax.experimental import pallas as pl
from jax.experimental.pallas import tpu as pltpu


def _round_up(x, m):
    return (x + m - 1) // m * m


# ----------------------------------------------------------------------------
# Pallas kernel: mean-normalisation (VPU) + projection matmul (MXU)
# ----------------------------------------------------------------------------
def bert_embedding_kernel(x_ref, inv_ref, w_ref, out_ref):
    """
    x_ref   : VMEM [tm, H]     masked sum over fix_len of the ScalarMix-folded
                               hidden states (pads contribute zero)
    inv_ref : VMEM [tm, 1]     1 / clamp(n_subwords, 1)   (f32)
    w_ref   : VMEM [H, O_pad]  projection weight, transposed, lane-dense
                               (grid-resident: constant index_map)
    out_ref : VMEM [tm, O_pad] lane-dense f32 output tile
    """
    # embed = bert.sum(2) / bert_lens  -- f32 on the VPU, free under the DMA.
    pooled = x_ref[...].astype(jnp.float32) * inv_ref[...]            # [tm, H]
    # projection: nn.Linear(H, O, bias=False) -> x @ W.T, f32 accumulation.
    out_ref[...] = jnp.dot(pooled.astype(w_ref.dtype), w_ref[...],
                           preferred_element_type=jnp.float32)


# ----------------------------------------------------------------------------
# Wrapper: ScalarMix fold, padded gather + masked F-reduction, tiling
# ----------------------------------------------------------------------------
def bert_embedding_forward(subwords, layer_tables, mix_weights, gamma, proj_w,
                           pad_index=0, *, block_m=512,
                           hidden_dtype=jnp.bfloat16):
    """
    subwords     : [B, S, F] int32
    layer_tables : [L, V, H] f32  -- deterministic per-layer "BERT" hidden states
    mix_weights  : [L] f32        -- ScalarMix weights (pre-softmax)
    gamma        : scalar f32     -- ScalarMix gamma
    proj_w       : [O, H] f32     -- torch nn.Linear(H, O, bias=False).weight
    block_m      : M-tile size. 512-1024 recommended on v5e/v6e (128 MiB VMEM);
                   the [tm, H] stream keeps even tm=1024 well under v7x's 64 MiB.
    hidden_dtype : dtype of the streamed pooled tensor and the MXU operands
                   (bf16 default halves HBM traffic; accumulation stays f32).
    returns      : [B, S, O] f32
    """
    B, S, F = subwords.shape
    L, V, H = layer_tables.shape
    O = proj_w.shape[0]
    M = B * S

    # TODO(synk): the pretrained transformer encoder (self.bert) and the
    # pad_sequence pack/unpack have no single-kernel Pallas equivalent; we
    # substitute deterministic per-layer embedding tables, under which the
    # pack -> encode -> masked_scatter_ round-trip is an identity on non-pad
    # positions (pads contribute zero, exactly as in the reference forward).

    # --- ScalarMix folded into the table (gamma * softmax(w) over layers) -----
    w = (gamma * jax.nn.softmax(mix_weights)).astype(jnp.float32)
    mixed_table = jnp.einsum("l,lvh->vh", w, layer_tables.astype(jnp.float32))  # [V, H]

    # --- pad the *tiny* index array before the gather (no pad of the big tensor)
    sub = 8 * 4 // jnp.dtype(hidden_dtype).itemsize        # 8 for f32, 16 for bf16
    tm = _round_up(max(sub, min(block_m, M)), sub)
    M_pad = _round_up(M, tm)
    flat = subwords.reshape(M, F)
    if M_pad != M:
        flat = jnp.pad(flat, ((0, M_pad - M), (0, 0)), constant_values=pad_index)

    mask = flat != pad_index                                            # [M_pad, F]
    inv_len = (1.0 / jnp.maximum(mask.sum(-1), 1).astype(jnp.float32))[:, None]

    # --- gather + masked sum over fix_len, fused by XLA -----------------------
    # Only a [M_pad, H] tensor is materialized and streamed to the kernel;
    # pad rows / pad subwords contribute zero (mask == 0).
    summed = jnp.einsum("mf,mfh->mh", mask.astype(jnp.float32),
                        mixed_table[flat]).astype(hidden_dtype)         # [M_pad, H]

    # --- lane-dense projection weight (transposed, N padded to 128) -----------
    # (Pad to 256 instead if the kernel ever becomes MXU-visible on v6e/v7x.)
    O_pad = _round_up(O, 128)
    proj_t = jnp.zeros((H, O_pad), dtype=hidden_dtype).at[:, :O].set(
        proj_w.T.astype(hidden_dtype))

    grid = (M_pad // tm,)
    out = pl.pallas_call(
        bert_embedding_kernel,
        out_shape=jax.ShapeDtypeStruct((M_pad, O_pad), jnp.float32),
        grid_spec=pltpu.PrefetchScalarGridSpec(
            num_scalar_prefetch=0,
            grid=grid,
            in_specs=[
                # pooled hidden states stream over M (double-buffered by Pallas)
                pl.BlockSpec((tm, H), lambda i: (i, 0)),
                # 1/len vector streams alongside (negligible bytes)
                pl.BlockSpec((tm, 1), lambda i: (i, 0)),
                # projection weight: constant index_map -> resident across grid
                # (small enough that a redundant second buffer is harmless here)
                pl.BlockSpec((H, O_pad), lambda i: (0, 0)),
            ],
            out_specs=pl.BlockSpec((tm, O_pad), lambda i: (i, 0)),
        ),
        compiler_params=pltpu.CompilerParams(
            dimension_semantics=("parallel",),     # shard M tiles across cores
            vmem_limit_bytes=32 * 1024 * 1024,     # ample: ~8 MiB at tm=1024, H=768
        ),
    )(summed, inv_len, proj_t)

    return out[:M, :O].reshape(B, S, O)


# ----------------------------------------------------------------------------
# Pure-JAX reference of the module's forward (same synthetic BERT tables)
# ----------------------------------------------------------------------------
def reference_forward(subwords, layer_tables, mix_weights, gamma, proj_w,
                      pad_index=0):
    mask = subwords != pad_index                                  # [B, S, F]
    hidden = layer_tables[:, subwords]                            # [L, B, S, F, H]
    w = gamma * jax.nn.softmax(mix_weights)
    bert = jnp.einsum("l,lbsfh->bsfh", w, hidden)                 # ScalarMix
    bert = bert * mask[..., None]                                 # masked_scatter_
    lens = jnp.maximum(mask.sum(-1), 1).astype(jnp.float32)       # bert_lens clamp
    embed = bert.sum(2) / lens[..., None]                         # mean over fix_len
    return embed @ proj_w.T                                       # projection


if __name__ == "__main__":
    key = jax.random.PRNGKey(0)
    B, S, F = 2, 8, 4           # batch, seq_len, fix_len
    L, V, H, O = 4, 64, 32, 24  # n_layers, vocab, hidden_size, n_out
    pad_index = 0

    k1, k2, k3, k4 = jax.random.split(key, 4)

    # tokens with realistic padding structure
    subwords = jax.random.randint(k1, (B, S, F), 1, V, dtype=jnp.int32)
    fix_keep = jax.random.randint(k2, (B, S, 1), 1, F + 1)
    subwords = jnp.where(jnp.arange(F)[None, None, :] < fix_keep, subwords, pad_index)
    subwords = subwords.at[:, S - 1, :].set(pad_index)  # all-pad word -> len clamp path

    # deterministic parameters
    layer_tables = 0.1 * jax.random.normal(k3, (L, V, H), dtype=jnp.float32)
    mix_weights = jnp.zeros((L,), jnp.float32)           # ScalarMix init: zeros
    gamma = jnp.float32(1.0)                             # ScalarMix init: 1.0
    proj_w = 0.1 * jax.random.normal(k4, (O, H), dtype=jnp.float32)

    ref = reference_forward(subwords, layer_tables, mix_weights, gamma,
                            proj_w, pad_index)

    # f32 path, small tile -> multi-step parallel grid gets exercised
    out = bert_embedding_forward(subwords, layer_tables, mix_weights, gamma,
                                 proj_w, pad_index, block_m=8,
                                 hidden_dtype=jnp.float32)
    out = jax.block_until_ready(out)
    assert out.shape == (B, S, O)
    assert jnp.allclose(out, ref, atol=1e-3, rtol=1e-3)

    # default bf16-streamed path (production config: half HBM traffic, bf16 MXU
    # operands, f32 accumulation, single/large tiles)
    out_bf16 = bert_embedding_forward(subwords, layer_tables, mix_weights, gamma,
                                      proj_w, pad_index)
    out_bf16 = jax.block_until_ready(out_bf16)
    assert jnp.allclose(out_bf16, ref, atol=1e-2, rtol=1e-2)

    print("KERNEL_OK")
</pallas_src>

<mosaic_0001>
module attributes {stable_mosaic.version = 11 : i64} {
  func.func @bert_embedding_kernel(%arg0: i32, %arg1: memref<8x32xf32, #tpu.memory_space<vmem>>, %arg2: memref<8x1xf32, #tpu.memory_space<vmem>>, %arg3: memref<32x128xf32, #tpu.memory_space<vmem>>, %arg4: memref<8x128xf32, #tpu.memory_space<vmem>>) attributes {dimension_semantics = [#tpu.dimension_semantics<parallel>], iteration_bounds = array<i64: 2>, scalar_prefetch = 0 : i64, scratch_operands = 0 : i64, tpu.core_type = #tpu.core_type<tc>, window_params = [{transform_indices = @transform_0, window_bounds = array<i64: 8, 32>}, {transform_indices = @transform_1, window_bounds = array<i64: 8, 1>}, {pipeline_mode = #tpu.pipeline_mode<synchronous>, transform_indices = @transform_2, window_bounds = array<i64: 32, 128>}, {transform_indices = @transform_3, window_bounds = array<i64: 8, 128>}]} {
    %c0 = arith.constant 0 : index
    %c0_0 = arith.constant 0 : index
    %0 = vector.load %arg1[%c0, %c0_0] : memref<8x32xf32, #tpu.memory_space<vmem>>, vector<8x32xf32>
    %c0_1 = arith.constant 0 : index
    %c0_2 = arith.constant 0 : index
    %1 = vector.load %arg2[%c0_1, %c0_2] : memref<8x1xf32, #tpu.memory_space<vmem>>, vector<8x1xf32>
    %2 = vector.broadcast %1 : vector<8x1xf32> to vector<8x32xf32>
    %3 = arith.mulf %0, %2 : vector<8x32xf32>
    %c0_3 = arith.constant 0 : index
    %c0_4 = arith.constant 0 : index
    %4 = vector.load %arg3[%c0_3, %c0_4] : memref<32x128xf32, #tpu.memory_space<vmem>>, vector<32x128xf32>
    %cst = arith.constant dense<0.000000e+00> : vector<8x128xf32>
    %5 = tpu.matmul %3, %4, %cst {dimension_numbers = #tpu.dot_dimension_numbers<[1], [0], [0], [1], [0, 0, 1, 1], [], []>} : vector<8x32xf32>, vector<32x128xf32>, vector<8x128xf32> -> vector<8x128xf32>
    %c0_5 = arith.constant 0 : index
    %c0_6 = arith.constant 0 : index
    %6 = vector.load %arg4[%c0_5, %c0_6] : memref<8x128xf32, #tpu.memory_space<vmem>>, vector<8x128xf32>
    tpu.vector_store %arg4[%c0_5, %c0_6], %5 {strides = array<i32>} : memref<8x128xf32, #tpu.memory_space<vmem>>, vector<8x128xf32>,
    return
  }
  func.func @transform_0(%arg0: i32) -> (i32, i32) {
    %c0_i32 = arith.constant 0 : i32
    %c0_i32_0 = arith.constant 0 : i32
    return %arg0, %c0_i32 : i32, i32
  }
  func.func @transform_1(%arg0: i32) -> (i32, i32) {
    %c0_i32 = arith.constant 0 : i32
    %c0_i32_0 = arith.constant 0 : i32
    return %arg0, %c0_i32 : i32, i32
  }
  func.func @transform_2(%arg0: i32) -> (i32, i32) {
    %c0_i32 = arith.constant 0 : i32
    %c0_i32_0 = arith.constant 0 : i32
    %c0_i32_1 = arith.constant 0 : i32
    return %c0_i32, %c0_i32_0 : i32, i32
  }
  func.func @transform_3(%arg0: i32) -> (i32, i32) {
    %c0_i32 = arith.constant 0 : i32
    %c0_i32_0 = arith.constant 0 : i32
    return %arg0, %c0_i32 : i32, i32
  }
}

</mosaic_0001>

<llo_original>
// kernel: tpu_custom_call.1
$region0: #{tpu_custom_call.1}
  #allocation0 [shape = 'u32[]', space=smem, size = 0x4, offset = 0x4, fixed_abs, tag = 'smem constant byte address 0x4 - core index']
  #allocation1 [shape = 'u32[144,128]{1,0:T(1,128)}', space=vmem, size = 0x12000, scoped, tag = 'internal scratch']
  %s0 = inlined_call_operand.vmem [shape: f32[16,32], index: 0, kind: input, shape index: {}]
  %s1 = inlined_call_operand.vmem [shape: f32[16,1], index: 1, kind: input, shape index: {}]
  %s2 = inlined_call_operand.hbm [shape: f32[32,128], index: 2, kind: input, shape index: {}]
  %s3 = inlined_call_operand.hbm [shape: f32[16,128], index: 3, kind: output, shape index: {}]
  %s4 = sld [smem:[#allocation0]]
  $region49: #{tpu_custom_call.1} parent=0
    _
  %s6 = ssub.s32 1, %s4
  %s7 = scalar_select 0, %s6, %s4
  $region1: #{tpu_custom_call.1} parent=0
    #allocation2 [shape = 'u8[16384]{0}', space=vmem, size = 0x4000, scoped, tag = 'input window, operand 2, single buffered']
    #allocation3 [shape = 's32[2]{0}', space=sflag, size = 0x8, scoped, tag = 'scoped memory for tpu_custom_call.1']
    #allocation4 [shape = 's32[2]{0}', space=sflag, size = 0x8, scoped, tag = 'scoped memory for tpu_custom_call.1']
    #allocation5 [shape = 'u8[8192]{0}', space=vmem, size = 0x2000, scoped, tag = 'output window, operand 0']
    %8 = vsyncpa [#allocation3], 0
    %9 = vsyncpa [#allocation4], 0
    %s10 = scalar_lea.sflag [#allocation4], 1
    %11 = vsyncpa %s10, 0
    loop: start=0, step=1, limit=4
    $region2: #{tpu_custom_call.1} parent=1 // loop_pre_header
      _
    $region3: #{tpu_custom_call.1} parent=1 // loop_header
      %s13 = sphi 0, %s17
      %p14 = scmp.ge.s32.totalorder %s13, 4
      %s23 = sphi 0, %s25
      %s26 = sphi 0, %s23
      %s27 = sphi 0, %s26
      %s43 = sphi 0, %s27
      %s49 = sphi 0, %s51
      %s52 = sphi 0, %s49
      %s53 = sphi 0, %s52
      %s69 = sphi 0, %s53
      %s73 = sphi 0, %s73
      %s75 = sphi 0, %s73
      %s76 = sphi 0, %s75
      %s90 = sphi 0, %s76
      %s96 = sphi 0, %s98
      %s99 = sphi 0, %s96
      %s100 = sphi 0, %s99
      %s116 = sphi 0, %s100
    $region4: #{tpu_custom_call.1} parent=1 // loop_header_branch
      %16 = sbr.rel (%p14) target = $region8
    $region5: #{tpu_custom_call.1} parent=1 // loop_body
      %s18 = ssub.s32 %s13, 1
      %s19 = ssub.s32 %s13, 2
      %s20 = sadd.s32 %s13, 1
      %s21 = ssub.s32 %s13, %s20
      %p22 = scmp.eq.s32.totalorder %s21, 0
      %s24 = sadd.s32 %s23, 1
      %s25 = scalar_select %p22, %s23, %s24
      %p28 = pneg %p22
      %p29 = scmp.eq.s32.totalorder %s13, 1
      %p30 = por %p28, %p29
      %p31 = scmp.ne.s32.totalorder %s23, %s26
      %p32 = scmp.eq.s32.totalorder %s13, 0
      %p33 = por %p31, %p32
      %p34 = scmp.ne.s32.totalorder %s23, %s26
      %p35 = scmp.eq.s32.totalorder %s18, 1
      %p36 = por %p34, %p35
      %p37 = scmp.ne.s32.totalorder %s26, %s27
      %p38 = scmp.eq.s32.totalorder %s18, 0
      %p39 = por %p37, %p38
      %p40 = scmp.ne.s32.totalorder %s26, %s27
      %p41 = scmp.eq.s32.totalorder %s19, 1
      %p42 = por %p40, %p41
      %p44 = scmp.ne.s32.totalorder %s27, %s43
      %p45 = scmp.eq.s32.totalorder %s19, 0
      %p46 = por %p44, %p45
      %s47 = ssub.s32 %s13, %s20
      %p48 = scmp.eq.s32.totalorder %s47, 0
      %s50 = sadd.s32 %s49, 1
      %s51 = scalar_select %p48, %s49, %s50
      %p54 = pneg %p48
      %p55 = scmp.eq.s32.totalorder %s13, 1
      %p56 = por %p54, %p55
      %p57 = scmp.ne.s32.totalorder %s49, %s52
      %p58 = scmp.eq.s32.totalorder %s13, 0
      %p59 = por %p57, %p58
      %p60 = scmp.ne.s32.totalorder %s49, %s52
      %p61 = scmp.eq.s32.totalorder %s18, 1
      %p62 = por %p60, %p61
      %p63 = scmp.ne.s32.totalorder %s52, %s53
      %p64 = scmp.eq.s32.totalorder %s18, 0
      %p65 = por %p63, %p64
      %p66 = scmp.ne.s32.totalorder %s52, %s53
      %p67 = scmp.eq.s32.totalorder %s19, 1
      %p68 = por %p66, %p67
      %p70 = scmp.ne.s32.totalorder %s53, %s69
      %p71 = scmp.eq.s32.totalorder %s19, 0
      %p72 = por %p70, %p71
      %s74 = sadd.s32 %s73, 1
      %p77 = scmp.eq.s32.totalorder %s13, 1
      %p78 = scmp.ne.s32.totalorder %s73, %s75
      %p79 = scmp.eq.s32.totalorder %s13, 0
      %p80 = por %p78, %p79
      %p81 = scmp.ne.s32.totalorder %s73, %s75
      %p82 = scmp.eq.s32.totalorder %s18, 1
      %p83 = por %p81, %p82
      %p84 = scmp.ne.s32.totalorder %s75, %s76
      %p85 = scmp.eq.s32.totalorder %s18, 0
      %p86 = por %p84, %p85
      %p87 = scmp.ne.s32.totalorder %s75, %s76
      %p88 = scmp.eq.s32.totalorder %s19, 1
      %p89 = por %p87, %p88
      %p91 = scmp.ne.s32.totalorder %s76, %s90
      %p92 = scmp.eq.s32.totalorder %s19, 0
      %p93 = por %p91, %p92
      %s94 = ssub.s32 %s13, %s20
      %p95 = scmp.eq.s32.totalorder %s94, 0
      %s97 = sadd.s32 %s96, 1
      %s98 = scalar_select %p95, %s96, %s97
      %p101 = pneg %p95
      %p102 = scmp.eq.s32.totalorder %s13, 1
      %p103 = por %p101, %p102
      %p104 = scmp.ne.s32.totalorder %s96, %s99
      %p105 = scmp.eq.s32.totalorder %s13, 0
      %p106 = por %p104, %p105
      %p107 = scmp.ne.s32.totalorder %s96, %s99
      %p108 = scmp.eq.s32.totalorder %s18, 1
      %p109 = por %p107, %p108
      %p110 = scmp.ne.s32.totalorder %s99, %s100
      %p111 = scmp.eq.s32.totalorder %s18, 0
      %p112 = por %p110, %p111
      %p113 = scmp.ne.s32.totalorder %s99, %s100
      %p114 = scmp.eq.s32.totalorder %s19, 1
      %p115 = por %p113, %p114
      %p117 = scmp.ne.s32.totalorder %s100, %s116
      %p118 = scmp.eq.s32.totalorder %s19, 0
      %p119 = por %p117, %p118
      %p120 = scmp.le.s32.totalorder 1, %s13
      %p121 = scmp.lt.s32.totalorder %s13, 3
      %p122 = pnand %p120, %p121
      %p123 = pneg %p122
      // Predicated region
      $region9: #{tpu_custom_call.1} parent=5 // pred_check
        _
      $region10: #{tpu_custom_call.1} parent=5 // pred_check_branch
        %125 = sbr.rel (%p122) target = $region12
      $region11: #{tpu_custom_call.1} parent=5 // pred_region
        %s126 = ssub.s32 %s13, 1
        // Predicated region
        $region13: #{tpu_custom_call.1} parent=11 // pred_check
          %p127 = pneg %p86
        $region14: #{tpu_custom_call.1} parent=11 // pred_check_branch
          %129 = sbr.rel (%p127) target = $region16
        $region15: #{tpu_custom_call.1} parent=11 // pred_region
          %s131 = ssub.s32 512, 512
          %132 = vsyncadd [#allocation3], %s131
          %s133 = sshll.u32 [#allocation2], 4
          %s134 = int_to_ptr.vmem [resolvable:$true] %s133
          %139 = dma.hbm_to_vmem [thread:$0]  %s2, 512, %s134, [#allocation3], 128, 128, 8
        $region16: #{tpu_custom_call.1} parent=11 // pred_fallthru
          _
      $region12: #{tpu_custom_call.1} parent=5 // pred_fallthru
        _
      %p140 = scmp.lt.s32.totalorder %s13, 2
      // Predicated region
      $region17: #{tpu_custom_call.1} parent=5 // pred_check
        %p141 = pneg %p140
      $region18: #{tpu_custom_call.1} parent=5 // pred_check_branch
        %143 = sbr.rel (%p141) target = $region20
      $region19: #{tpu_custom_call.1} parent=5 // pred_region
        // Predicated region
        $region21: #{tpu_custom_call.1} parent=19 // pred_check
          %p144 = pneg %p33
        $region22: #{tpu_custom_call.1} parent=19 // pred_check_branch
          %146 = sbr.rel (%p144) target = $region24
        $region23: #{tpu_custom_call.1} parent=19 // pred_region
          %p147 = scmp.lt.s32.totalorder %s13, 1
          %s148 = scalar_select %p147, %s13, 1
          %s149 = smul.addr %s148, 8
          %s150 = scalar_lea.vmem %s0, %s149
        $region24: #{tpu_custom_call.1} parent=19 // pred_fallthru
          _
        // Predicated region
        $region25: #{tpu_custom_call.1} parent=19 // pred_check
          %p151 = pneg %p59
        $region26: #{tpu_custom_call.1} parent=19 // pred_check_branch
          %153 = sbr.rel (%p151) target = $region28
        $region27: #{tpu_custom_call.1} parent=19 // pred_region
          %p154 = scmp.lt.s32.totalorder %s13, 1
          %s155 = scalar_select %p154, %s13, 1
          %s156 = smul.addr %s155, 8
          %s157 = scalar_lea.vmem %s1, %s156
        $region28: #{tpu_custom_call.1} parent=19 // pred_fallthru
          _
      $region20: #{tpu_custom_call.1} parent=5 // pred_fallthru
        _
      %p158 = scmp.le.s32.totalorder 1, %s13
      %p159 = scmp.lt.s32.totalorder %s13, 3
      %p160 = pnand %p158, %p159
      %p161 = pneg %p160
      // Predicated region
      $region29: #{tpu_custom_call.1} parent=5 // pred_check
        _
      $region30: #{tpu_custom_call.1} parent=5 // pred_check_branch
        %163 = sbr.rel (%p160) target = $region32
      $region31: #{tpu_custom_call.1} parent=5 // pred_region
        %s164 = ssub.s32 %s13, 1
        // Predicated region
        $region33: #{tpu_custom_call.1} parent=31 // pred_check
          %p165 = pneg %p86
        $region34: #{tpu_custom_call.1} parent=31 // pred_check_branch
          %167 = sbr.rel (%p165) target = $region36
        $region35: #{tpu_custom_call.1} parent=31 // pred_region
          %168 = dma.done [#allocation3], 512
        $region36: #{tpu_custom_call.1} parent=31 // pred_fallthru
          _
        %p169 = scmp.lt.s32.totalorder %s18, 1
        %s170 = scalar_select %p169, %s18, 1
        %s171 = smul.addr %s170, 8
        %s172 = scalar_lea.vmem %s0, %s171
        %p173 = pneg %p39
        %p174 = pneg %p36
        %p175 = scmp.lt.s32.totalorder %s18, 1
        %s176 = scalar_select %p175, %s18, 1
        %s177 = smul.addr %s176, 8
        %s178 = scalar_lea.vmem %s1, %s177
        %p179 = pneg %p65
        %p180 = pneg %p62
        %p181 = pneg %p86
        %p182 = pneg %p83
        %p183 = pneg %p112
        %p184 = pneg %p109
        %s185 = sand.u32 %s99, 1
        %s186 = scalar_lea.sflag [#allocation4], %s185
        %s187 = sand.u32 %s99, 1
        %s188 = smul.addr %s187, 8
        %s189 = scalar_lea.vmem [#allocation5], %s188
        %p190 = scmp.lt.s32.totalorder %s18, 1
        %s191 = scalar_select %p190, %s18, 1
        %s192 = smul.addr %s191, 8
        %s193 = scalar_lea.vmem %s0, %s192
        %p194 = scmp.lt.s32.totalorder %s18, 1
        %s195 = scalar_select %p194, %s18, 1
        %s196 = smul.addr %s195, 8
        %s197 = scalar_lea.vmem %s1, %s196
        %v198 = vld [vmem:[%s193] sm:$0xff]
        %v199 = vld [vmem:[%s197] sm:$0xff]
        %201 = vset.pattern.permute.xlu0 0
        %202 = vperm.xlu0 %201, %v199
        %v203 = vpop.permute.xlu0 %202
        %v205 = vmul.f32 %v198, %v203
        %v206 = vld [vmem:[#allocation2] sm:$0xff]
        %v207 = vld [vmem:[#allocation2 + $0x8] sm:$0xff]
        %v208 = vld [vmem:[#allocation2 + $0x10] sm:$0xff]
        %v209 = vld [vmem:[#allocation2 + $0x18] sm:$0xff]
        %vm210 = vcmask 261120
        %v212 = vsel %vm210, %v205, 0
        %214 = vmatprep.subr.mxu0 0.0
        %215 = vmatpush1.msra.mxu0 %v206
        %216 = vmatprep.subr.mxu0 0.0
        %217 = vmatpush1.msra.mxu0 %v207
        %218 = vmatprep.subr.mxu0 0.0
        %219 = vmatpush1.msra.mxu0 %v208
        %220 = vmatprep.subr.mxu0 0.0
        %221 = vmatpush1.msra.mxu0 %v209
        %222 = vmatprep.subr.mxu0 0.0
        %223 = vmatpush1.msra.mxu0 0.0
        %224 = vmatprep.subr.mxu0 0.0
        %225 = vmatpush1.msra.mxu0 0.0
        %226 = vmatprep.subr.mxu0 0.0
        %227 = vmatpush1.msra.mxu0 0.0
        %228 = vmatprep.subr.mxu0 0.0
        %229 = vmatpush1.msra.mxu0 0.0
        %230 = vmatprep.subr.mxu0 0.0
        %231 = vmatpush1.msra.mxu0 0.0
        %232 = vmatprep.subr.mxu0 0.0
        %233 = vmatpush1.msra.mxu0 0.0
        %234 = vmatprep.subr.mxu0 0.0
        %235 = vmatpush1.msra.mxu0 0.0
        %236 = vmatprep.subr.mxu0 0.0
        %237 = vmatpush1.msra.mxu0 0.0
        %238 = vmatprep.subr.mxu0 0.0
        %239 = vmatpush1.msra.mxu0 0.0
        %240 = vmatprep.subr.mxu0 0.0
        %241 = vmatpush1.msra.mxu0 0.0
        %242 = vmatprep.subr.mxu0 0.0
        %243 = vmatpush1.msra.mxu0 0.0
        %244 = vmatprep.subr.mxu0 0.0
        %245 = vmatpush1.msra.mxu0 0.0
        %246 = vmatprep.subr.mxu0 0.0
        %247 = vmatpush1.msra.mxu0 0.0
        %248 = vmatprep.subr.mxu0 0.0
        %249 = vmatpush1.msra.mxu0 0.0
        %250 = vmatprep.subr.mxu0 0.0
        %251 = vmatpush1.msra.mxu0 0.0
        %252 = vmatprep.subr.mxu0 0.0
        %253 = vmatpush1.msra.mxu0 0.0
        %254 = vmatprep.subr.mxu0 0.0
        %255 = vmatpush1.msra.mxu0 0.0
        %256 = vmatprep.subr.mxu0 0.0
        %257 = vmatpush1.msra.mxu0 0.0
        %258 = vmatprep.subr.mxu0 0.0
        %259 = vmatpush1.msra.mxu0 0.0
        %260 = vmatprep.subr.mxu0 0.0
        %261 = vmatpush1.msra.mxu0 0.0
        %262 = vmatprep.subr.mxu0 0.0
        %263 = vmatpush1.msra.mxu0 0.0
        %264 = vmatprep.subr.mxu0 0.0
        %265 = vmatpush1.msra.mxu0 0.0
        %266 = vmatprep.subr.mxu0 0.0
        %267 = vmatpush1.msra.mxu0 0.0
        %268 = vmatprep.subr.mxu0 0.0
        %269 = vmatpush1.msra.mxu0 0.0
        %270 = vmatprep.subr.mxu0 0.0
        %271 = vmatpush1.msra.mxu0 0.0
        %272 = vmatprep.subr.mxu0 0.0
        %273 = vmatpush1.msra.mxu0 0.0
        %274 = vmatprep.subr.mxu0 0.0
        %275 = vmatpush1.msra.mxu0 0.0
        %276 = vmatprep.subr.mxu0 0.0
        %277 = vmatpush1.msra.mxu0 0.0
        %278 = vmatprep.mubr.f32.mxu0 0.0
        %279 = vmatmul.mubr.f32.gmra.mrb[0].mxu0 %v212
        %v280 = vpop.f32.mrb[0].mxu0
        %v281 = vadd.f32 0.0, %v280
        %v282 = vpop.f32.mrb[0].mxu0
        %283 = vdwg.mxu0
        %284 = vst [vmem:[%s189] sm:$0xff] %v281
        %s285 = sand.u32 %s99, 1
        %s286 = scalar_lea.sflag [#allocation4], %s285
        %s287 = sand.u32 %s99, 1
        %s288 = smul.addr %s287, 8
        %s289 = scalar_lea.vmem [#allocation5], %s288
        // Predicated region
        $region37: #{tpu_custom_call.1} parent=31 // pred_check
          %p290 = pneg %p109
        $region38: #{tpu_custom_call.1} parent=31 // pred_check_branch
          %292 = sbr.rel (%p290) target = $region40
        $region39: #{tpu_custom_call.1} parent=31 // pred_region
          %s294 = ssub.s32 128, 128
          %295 = vsyncadd %s286, %s294
          %s296 = smul.addr %s18, 128
          %s297 = scalar_lea.hbm %s3, %s296
          %s299 = sshll.u32 %s289, 4
          %s300 = int_to_ptr.vmem [resolvable:$true] %s299
          %302 = dma.vmem_to_hbm [thread:$0]  %s300, 128, %s297, %s286
        $region40: #{tpu_custom_call.1} parent=31 // pred_fallthru
          _
      $region32: #{tpu_custom_call.1} parent=5 // pred_fallthru
        _
      %p303 = scmp.le.s32.totalorder 2, %s13
      // Predicated region
      $region41: #{tpu_custom_call.1} parent=5 // pred_check
        %p304 = pneg %p303
      $region42: #{tpu_custom_call.1} parent=5 // pred_check_branch
        %306 = sbr.rel (%p304) target = $region44
      $region43: #{tpu_custom_call.1} parent=5 // pred_region
        %s307 = ssub.s32 %s13, 2
        // Predicated region
        $region45: #{tpu_custom_call.1} parent=43 // pred_check
          %p308 = pneg %p115
        $region46: #{tpu_custom_call.1} parent=43 // pred_check_branch
          %310 = sbr.rel (%p308) target = $region48
        $region47: #{tpu_custom_call.1} parent=43 // pred_region
          %s311 = sand.u32 %s100, 1
          %s312 = scalar_lea.sflag [#allocation4], %s311
          %s313 = sand.u32 %s100, 1
          %s314 = smul.addr %s313, 8
          %s315 = scalar_lea.vmem [#allocation5], %s314
          %316 = dma.done %s312, 128
        $region48: #{tpu_custom_call.1} parent=43 // pred_fallthru
          _
      $region44: #{tpu_custom_call.1} parent=5 // pred_fallthru
        _
    $region6: #{tpu_custom_call.1} parent=1 // loop_footer
      %s17 = sadd.s32 1, %s13
    $region7: #{tpu_custom_call.1} parent=1 // loop_footer_branch
      %12 = sbr.rel target = $region3
    $region8: #{tpu_custom_call.1} parent=1 // loop_exit
      _
    %317 = vsyncpa [#allocation3], 1
    %s318 = scalar_lea.sflag [#allocation3], 1
    %319 = vsyncpa %s318, 1
    %320 = vsyncpa [#allocation4], 1
    %s321 = scalar_lea.sflag [#allocation4], 1
    %322 = vsyncpa %s321, 1

</llo_original>
